<compile_context>
chip_gen: v7x
topology: tpu7x:2x2x1
jax: 0.10.0
libtpu: 0.0.40
codegen_flags: <defaults>
</compile_context>

<pallas_src>
import functools

import jax
import jax.numpy as jnp
from jax.experimental import pallas as pl
from jax.experimental.pallas import tpu as pltpu


def _identity_copy_kernel(x_ref, o_ref):
    # Pure pass-through: SwinBlock.forward(x) == x
    o_ref[...] = x_ref[...]


def _identity_copy_2d(x2d, tile_rows):
    """Tiled, pipelined, input-aliased identity over a lane-dense 2-D slab."""
    rows, lanes = x2d.shape
    grid = (pl.cdiv(rows, tile_rows),)
    return pl.pallas_call(
        _identity_copy_kernel,
        out_shape=jax.ShapeDtypeStruct(x2d.shape, x2d.dtype),
        grid_spec=pltpu.PrefetchScalarGridSpec(
            num_scalar_prefetch=0,
            grid=grid,
            in_specs=[pl.BlockSpec((tile_rows, lanes), lambda i: (i, 0))],
            out_specs=pl.BlockSpec((tile_rows, lanes), lambda i: (i, 0)),
        ),
        # Identity: let the output alias the input buffer (no HBM round-trip
        # materialized for a fresh output allocation).
        input_output_aliases={0: 0},
        compiler_params=pltpu.CompilerParams(
            dimension_semantics=("parallel",),  # shards across TCs on v7x
        ),
    )(x2d)


@functools.partial(jax.jit, static_argnames=("embed_dim",))
def swin_block_forward(x, embed_dim=None):
    """JAX/Pallas equivalent of SwinBlock(embed_dim).forward(x).

    `embed_dim` is accepted for API parity but (as in the PyTorch module)
    defines no parameters and does not affect the computation.
    """
    orig_shape = x.shape
    total = x.size
    if total == 0:
        return x

    # Lane-dense flatten (done in the jit-ed wrapper -> free layout plumbing).
    if total % 128 == 0:
        rows, lanes = total // 128, 128
    else:
        # Fallback: single row, block equals full array (always legal).
        rows, lanes = 1, total
    x2d = x.reshape(rows, lanes)

    # Largest tile within a conservative VMEM budget on all generations:
    # 512 rows * 128 lanes * 4 B = 256 KiB per buffer (~1 MiB double-buffered
    # in+out), well under the 16/32 MiB scoped defaults (v5e / v6e / v7x).
    tile_rows = 512 if rows >= 512 else rows  # full-dim block if small

    out2d = _identity_copy_2d(x2d, tile_rows)
    return out2d.reshape(orig_shape)


if __name__ == "__main__":
    key = jax.random.PRNGKey(0)
    # Small NCHW input consistent with a vision-transformer block input.
    x = jax.random.normal(key, (2, 4, 16, 16), dtype=jnp.float32)

    # SwinBlock(embed_dim=4) defines no parameters; nothing to initialize.
    y = swin_block_forward(x, embed_dim=4)
    y = jax.block_until_ready(y)

    assert y.shape == x.shape and y.dtype == x.dtype
    assert bool(jnp.all(y == x))
    print("KERNEL_OK")
</pallas_src>

<mosaic_0001>
module attributes {stable_mosaic.version = 11 : i64} {
  func.func @_identity_copy_kernel(%arg0: i32, %arg1: memref<16x128xf32, #tpu.memory_space<vmem>>, %arg2: memref<16x128xf32, #tpu.memory_space<vmem>>) attributes {dimension_semantics = [#tpu.dimension_semantics<parallel>], iteration_bounds = array<i64: 1>, scalar_prefetch = 0 : i64, scratch_operands = 0 : i64, tpu.core_type = #tpu.core_type<tc>, window_params = [{transform_indices = @transform_0, window_bounds = array<i64: 16, 128>}, {transform_indices = @transform_1, window_bounds = array<i64: 16, 128>}]} {
    %c0 = arith.constant 0 : index
    %c0_0 = arith.constant 0 : index
    %0 = vector.load %arg1[%c0, %c0_0] : memref<16x128xf32, #tpu.memory_space<vmem>>, vector<16x128xf32>
    %c0_1 = arith.constant 0 : index
    %c0_2 = arith.constant 0 : index
    %1 = vector.load %arg2[%c0_1, %c0_2] : memref<16x128xf32, #tpu.memory_space<vmem>>, vector<16x128xf32>
    tpu.vector_store %arg2[%c0_1, %c0_2], %0 {strides = array<i32>} : memref<16x128xf32, #tpu.memory_space<vmem>>, vector<16x128xf32>,
    return
  }
  func.func @transform_0(%arg0: i32) -> (i32, i32) {
    %c0_i32 = arith.constant 0 : i32
    %c0_i32_0 = arith.constant 0 : i32
    return %arg0, %c0_i32 : i32, i32
  }
  func.func @transform_1(%arg0: i32) -> (i32, i32) {
    %c0_i32 = arith.constant 0 : i32
    %c0_i32_0 = arith.constant 0 : i32
    return %arg0, %c0_i32 : i32, i32
  }
}

</mosaic_0001>

<llo_original>
// kernel: swin_block_forward.1
$region0: #{swin_block_forward.1}
  #allocation0 [shape = 'u32[]', space=smem, size = 0x4, offset = 0x4, fixed_abs, tag = 'smem constant byte address 0x4 - core index']
  #allocation1 [shape = 'u32[144,128]{1,0:T(1,128)}', space=vmem, size = 0x12000, scoped, tag = 'internal scratch']
  %s0 = inlined_call_operand.vmem [shape: f32[16,128], index: 0, kind: input, shape index: {}, may-alias: {0,1}]
  %s1 = inlined_call_operand.vmem [shape: f32[16,128], index: 1, kind: output, shape index: {}, may-alias: {0,1}]
  %s2 = sld [smem:[#allocation0]]
  $region14: #{swin_block_forward.1} parent=0
    _
  %s4 = ssub.s32 1, %s2
  %s5 = scalar_select 0, %s4, %s2
  // Predicated region
  $region2: #{swin_block_forward.1} parent=0 // pred_check
    _
  $region3: #{swin_block_forward.1} parent=0 // pred_check_branch
    %7 = sbr.rel (0) target = $region5
  $region4: #{swin_block_forward.1} parent=0 // pred_region
    _
  $region5: #{swin_block_forward.1} parent=0 // pred_fallthru
    _
  %v8 = vld [vmem:[%s0] sm:$0xff]
  %v9 = vld [vmem:[%s0 + $0x8] sm:$0xff]
  %10 = vst [vmem:[%s1] sm:$0xff] %v8
  %11 = vst [vmem:[%s1 + $0x8] sm:$0xff] %v9
  // Predicated region
  $region6: #{swin_block_forward.1} parent=0 // pred_check
    _
  $region7: #{swin_block_forward.1} parent=0 // pred_check_branch
    %13 = sbr.rel (0) target = $region9
  $region8: #{swin_block_forward.1} parent=0 // pred_region
    _
  $region9: #{swin_block_forward.1} parent=0 // pred_fallthru
    _
  // Predicated region
  $region10: #{swin_block_forward.1} parent=0 // pred_check
    _
  $region11: #{swin_block_forward.1} parent=0 // pred_check_branch
    %15 = sbr.rel (0) target = $region13
  $region12: #{swin_block_forward.1} parent=0 // pred_region
    _
  $region13: #{swin_block_forward.1} parent=0 // pred_fallthru
    _

</llo_original>
